<compile_context>
chip_gen: v7x
topology: tpu7x:2x2x1
jax: 0.10.0
libtpu: 0.0.40
codegen_flags: <defaults>
</compile_context>

<pallas_src>
import numpy as np
import jax
import jax.numpy as jnp
from jax import lax
from jax.experimental import pallas as pl
from jax.experimental.pallas import tpu as pltpu  # noqa: F401  (kept for TPU-specific tuning hooks)

# ---------------- model config (small, consistent with the module) ----------------
N_HEADS = 4
D_K     = 8
HID_DIM = 32
D_MODEL = N_HEADS * D_K          # 32
SEQ_LEN = 8
BATCH   = 2
SCALE   = D_K ** (-0.5)
LN_EPS  = 1e-5
NEG_INF = -1e30
# dropout = 0.0 -> identity, nothing to do.

BN  = BATCH * SEQ_LEN            # 16 : one row per (batch, token)
BHN = N_HEADS * BN               # 64 : one row per (head, batch, token)  r = h*BN + b*SEQ_LEN + i

# ---------------- host-built structural constants (compile-time, one packed operand) ------
_r         = np.arange(BHN)
_row_head  = _r // BN                       # head h of attention row
_row_batch = (_r % BN) // SEQ_LEN           # batch b of attention row
_col_head  = np.arange(D_MODEL) // D_K      # head h' of feature column
_key_batch = np.arange(BN) // SEQ_LEN       # batch b' of key column

_HEAD_SEL = (_row_head[:, None] == _col_head[None, :]).astype(np.float32)   # (64, 32) 1/0
_QMASK    = (SCALE * _HEAD_SEL).astype(np.float32)                          # SCALE folded in
_BBIAS    = np.zeros((BHN, D_MODEL), np.float32)                            # padded to 32 cols
_BBIAS[:, :BN] = np.where(_row_batch[:, None] == _key_batch[None, :], 0.0, NEG_INF)

CONSTS = np.concatenate([_QMASK, _HEAD_SEL, _BBIAS], axis=0)                # (192, 32)


def attention_kernel(x_ref, p_ref, w_ref, c_ref, o_ref):
    """Single invocation handles the full (B*N, D) problem. All math in f32."""
    f32 = jnp.float32

    x = x_ref[...].astype(f32)                       # (BN, HID)
    p = p_ref[...].astype(f32)                       # (3, HID) = [gamma; beta; b_out]
    gamma, beta, bias = p[0:1, :], p[1:2, :], p[2:3, :]

    # ---- LayerNorm (torch semantics: biased variance, eps inside rsqrt) ----
    mean = jnp.mean(x, axis=-1, keepdims=True)
    var = jnp.mean((x - mean) ** 2, axis=-1, keepdims=True)
    xn = (x - mean) * lax.rsqrt(var + LN_EPS) * gamma + beta

    # ---- fused lane-dense weights: [W_qkv | W_out] as one (32, 128) load ----
    w = w_ref[...].astype(f32)
    w_qkv = w[:, 0:3 * D_MODEL]                      # (HID, 96)
    w_out = w[:, 3 * D_MODEL:3 * D_MODEL + HID_DIM]  # (D_MODEL, HID)

    # ---- QKV projection (no bias): one (16,32)x(32,96) MXU push ----
    qkv = jnp.dot(xn, w_qkv, preferred_element_type=f32)    # (BN, 96), head-major columns
    q = qkv[:, 0 * D_MODEL:1 * D_MODEL]
    k = qkv[:, 1 * D_MODEL:2 * D_MODEL]
    v = qkv[:, 2 * D_MODEL:3 * D_MODEL]

    # ---- packed structural constants (no in-kernel iota/compare/select) ----
    c = c_ref[...]
    qmask = c[0:BHN, :]                              # SCALE on head-matching feature cols
    hmask = c[BHN:2 * BHN, :]                        # 1.0   on head-matching feature cols
    bbias = c[2 * BHN:3 * BHN, 0:BN]                 # 0 / -1e30 cross-batch additive mask

    # ---- replicate q over heads (sublane concat, no MXU) and select per-head features ----
    q_rep = jnp.concatenate([q] * N_HEADS, axis=0)   # (BHN, D_MODEL), row = (h, b, i)
    q_sel = q_rep * qmask                            # SCALE already folded into qmask

    # ---- scores for every (h,b,i) row vs every key (b',j): one matmul, no K transpose ----
    scores = lax.dot_general(q_sel, k, (((1,), (1,)), ((), ())),
                             preferred_element_type=f32) + bbias        # (BHN, BN)

    # ---- numerically-stable softmax over keys (exact division; cross-batch exps -> 0) ----
    m = jnp.max(scores, axis=-1, keepdims=True)
    e = jnp.exp(scores - m)
    attn = e / jnp.sum(e, axis=-1, keepdims=True)

    # ---- attention-weighted values for all rows in one matmul ----
    ctx = jnp.dot(attn, v, preferred_element_type=f32)                   # (BHN, D_MODEL)

    # ---- head merge: keep head-h feature block from head-h row block, sum blocks (VPU) ----
    ctx_sel = ctx * hmask
    merged = ctx_sel[0:BN, :]
    for h in range(1, N_HEADS):
        merged = merged + ctx_sel[h * BN:(h + 1) * BN, :]                # (BN, D_MODEL)

    # ---- output projection (Linear with bias). dropout(p=0) omitted (identity). ----
    y = jnp.dot(merged, w_out, preferred_element_type=f32) + bias
    o_ref[...] = y.astype(o_ref.dtype)


@jax.jit
def vit_attention(x, gamma, beta, w_qkv, w_out, b_out):
    B, N, D = x.shape
    assert (B, N, D) == (BATCH, SEQ_LEN, HID_DIM)
    x2 = x.reshape(B * N, D)                            # flat (B*N, D) slab (free reshape)
    params = jnp.stack([gamma, beta, b_out], axis=0)    # (3, D): one DMA for small params
    w_fused = jnp.concatenate([w_qkv, w_out], axis=1)   # (D, 128): lane-dense fused weights
    consts = jnp.asarray(CONSTS)                        # compile-time constant -> HLO literal

    out2 = pl.pallas_call(
        attention_kernel,
        out_shape=jax.ShapeDtypeStruct((B * N, D), x.dtype),
        in_specs=[
            pl.BlockSpec((B * N, D), lambda: (0, 0)),                    # x (all tokens/batches)
            pl.BlockSpec((3, D), lambda: (0, 0)),                        # [gamma; beta; b_out]
            pl.BlockSpec((D, 3 * D_MODEL + HID_DIM), lambda: (0, 0)),    # [W_qkv | W_out]
            pl.BlockSpec((3 * BHN, D_MODEL), lambda: (0, 0)),            # packed structural consts
        ],
        out_specs=pl.BlockSpec((B * N, D), lambda: (0, 0)),
    )(x2, params, w_fused, consts)
    return out2.reshape(B, N, D)


def reference(x, gamma, beta, w_qkv, w_out, b_out):
    """Pure-JAX reference mirroring the PyTorch forward."""
    xf = x.astype(jnp.float32)
    mean = jnp.mean(xf, -1, keepdims=True)
    var = jnp.mean((xf - mean) ** 2, -1, keepdims=True)
    xn = (xf - mean) / jnp.sqrt(var + LN_EPS) * gamma + beta
    qkv = xn @ w_qkv
    q, k, v = jnp.split(qkv, 3, axis=-1)

    def heads(t):  # b n (h d) -> b h n d
        B, N, _ = t.shape
        return jnp.transpose(t.reshape(B, N, N_HEADS, D_K), (0, 2, 1, 3))

    q, k, v = heads(q), heads(k), heads(v)
    dots = jnp.einsum('bhnd,bhmd->bhnm', q, k) * SCALE
    attn = jax.nn.softmax(dots, axis=-1)
    o = jnp.einsum('bhnm,bhmd->bhnd', attn, v)
    o = jnp.transpose(o, (0, 2, 1, 3)).reshape(x.shape[0], SEQ_LEN, D_MODEL)
    return o @ w_out + b_out


if __name__ == "__main__":
    key = jax.random.PRNGKey(0)
    kx, kg, kbt, kq, ko, kb = jax.random.split(key, 6)

    x = jax.random.normal(kx, (BATCH, SEQ_LEN, HID_DIM), dtype=jnp.float32)
    gamma = 1.0 + 0.1 * jax.random.normal(kg, (HID_DIM,), dtype=jnp.float32)   # LN weight
    beta = 0.02 * jax.random.normal(kbt, (HID_DIM,), dtype=jnp.float32)        # LN bias
    w_qkv = 0.05 * jax.random.normal(kq, (HID_DIM, 3 * D_MODEL), dtype=jnp.float32)
    w_out = 0.05 * jax.random.normal(ko, (D_MODEL, HID_DIM), dtype=jnp.float32)
    b_out = 0.01 * jax.random.normal(kb, (HID_DIM,), dtype=jnp.float32)

    out = jax.block_until_ready(vit_attention(x, gamma, beta, w_qkv, w_out, b_out))
    ref = reference(x, gamma, beta, w_qkv, w_out, b_out)

    assert out.shape == (BATCH, SEQ_LEN, HID_DIM)
    err = float(jnp.max(jnp.abs(out - ref)))
    # Exact softmax division restored; remaining error is only default-precision matmul
    # rounding (same default as the JAX reference), comfortably under 1e-3.
    assert err < 1e-3, f"mismatch vs reference: max abs err = {err}"
    print("KERNEL_OK")
</pallas_src>

<mosaic_0001>
module attributes {stable_mosaic.version = 11 : i64} {
  func.func @attention_kernel(%arg0: memref<16x32xf32, #tpu.memory_space<vmem>>, %arg1: memref<3x32xf32, #tpu.memory_space<vmem>>, %arg2: memref<32x128xf32, #tpu.memory_space<vmem>>, %arg3: memref<192x32xf32, #tpu.memory_space<vmem>>, %arg4: memref<16x32xf32, #tpu.memory_space<vmem>>) attributes {dimension_semantics = [], scalar_prefetch = 0 : i64, scratch_operands = 0 : i64, tpu.core_type = #tpu.core_type<tc>} {
    %c0 = arith.constant 0 : index
    %c0_0 = arith.constant 0 : index
    %0 = vector.load %arg0[%c0, %c0_0] : memref<16x32xf32, #tpu.memory_space<vmem>>, vector<16x32xf32>
    %c0_1 = arith.constant 0 : index
    %c0_2 = arith.constant 0 : index
    %1 = vector.load %arg1[%c0_1, %c0_2] : memref<3x32xf32, #tpu.memory_space<vmem>>, vector<3x32xf32>
    %2 = vector.extract_strided_slice %1 {offsets = [0, 0], sizes = [1, 32], strides = [1, 1]} : vector<3x32xf32> to vector<1x32xf32>
    %3 = vector.extract_strided_slice %1 {offsets = [1, 0], sizes = [1, 32], strides = [1, 1]} : vector<3x32xf32> to vector<1x32xf32>
    %4 = vector.extract_strided_slice %1 {offsets = [2, 0], sizes = [1, 32], strides = [1, 1]} : vector<3x32xf32> to vector<1x32xf32>
    %cst = arith.constant dense<0.000000e+00> : vector<16xf32>
    %5 = vector.multi_reduction <add>, %0, %cst [1] : vector<16x32xf32> to vector<16xf32>
    %6 = vector.shape_cast %5 : vector<16xf32> to vector<16x1xf32>
    %cst_3 = arith.constant 3.200000e+01 : f32
    %7 = vector.broadcast %cst_3 : f32 to vector<16x1xf32>
    %8 = arith.divf %6, %7 : vector<16x1xf32>
    %9 = vector.broadcast %8 : vector<16x1xf32> to vector<16x32xf32>
    %10 = arith.subf %0, %9 : vector<16x32xf32>
    %11 = arith.mulf %10, %10 : vector<16x32xf32>
    %cst_4 = arith.constant dense<0.000000e+00> : vector<16xf32>
    %12 = vector.multi_reduction <add>, %11, %cst_4 [1] : vector<16x32xf32> to vector<16xf32>
    %13 = vector.shape_cast %12 : vector<16xf32> to vector<16x1xf32>
    %cst_5 = arith.constant 3.200000e+01 : f32
    %14 = vector.broadcast %cst_5 : f32 to vector<16x1xf32>
    %15 = arith.divf %13, %14 : vector<16x1xf32>
    %16 = vector.broadcast %8 : vector<16x1xf32> to vector<16x32xf32>
    %17 = arith.subf %0, %16 : vector<16x32xf32>
    %cst_6 = arith.constant 9.99999974E-6 : f32
    %18 = vector.broadcast %cst_6 : f32 to vector<16x1xf32>
    %19 = arith.addf %15, %18 : vector<16x1xf32>
    %20 = math.rsqrt %19 : vector<16x1xf32>
    %21 = vector.broadcast %20 : vector<16x1xf32> to vector<16x32xf32>
    %22 = arith.mulf %17, %21 : vector<16x32xf32>
    %23 = vector.broadcast %2 : vector<1x32xf32> to vector<16x32xf32>
    %24 = arith.mulf %22, %23 : vector<16x32xf32>
    %25 = vector.broadcast %3 : vector<1x32xf32> to vector<16x32xf32>
    %26 = arith.addf %24, %25 : vector<16x32xf32>
    %c0_7 = arith.constant 0 : index
    %c0_8 = arith.constant 0 : index
    %27 = vector.load %arg2[%c0_7, %c0_8] : memref<32x128xf32, #tpu.memory_space<vmem>>, vector<32x128xf32>
    %28 = vector.extract_strided_slice %27 {offsets = [0, 0], sizes = [32, 96], strides = [1, 1]} : vector<32x128xf32> to vector<32x96xf32>
    %29 = vector.extract_strided_slice %27 {offsets = [0, 96], sizes = [32, 32], strides = [1, 1]} : vector<32x128xf32> to vector<32x32xf32>
    %cst_9 = arith.constant dense<0.000000e+00> : vector<16x96xf32>
    %30 = tpu.matmul %26, %28, %cst_9 {dimension_numbers = #tpu.dot_dimension_numbers<[1], [0], [0], [1], [0, 0, 1, 1], [], []>} : vector<16x32xf32>, vector<32x96xf32>, vector<16x96xf32> -> vector<16x96xf32>
    %31 = vector.extract_strided_slice %30 {offsets = [0, 0], sizes = [16, 32], strides = [1, 1]} : vector<16x96xf32> to vector<16x32xf32>
    %32 = vector.extract_strided_slice %30 {offsets = [0, 32], sizes = [16, 32], strides = [1, 1]} : vector<16x96xf32> to vector<16x32xf32>
    %33 = vector.extract_strided_slice %30 {offsets = [0, 64], sizes = [16, 32], strides = [1, 1]} : vector<16x96xf32> to vector<16x32xf32>
    %c0_10 = arith.constant 0 : index
    %c0_11 = arith.constant 0 : index
    %34 = vector.load %arg3[%c0_10, %c0_11] : memref<192x32xf32, #tpu.memory_space<vmem>>, vector<192x32xf32>
    %35 = vector.extract_strided_slice %34 {offsets = [0, 0], sizes = [64, 32], strides = [1, 1]} : vector<192x32xf32> to vector<64x32xf32>
    %36 = vector.extract_strided_slice %34 {offsets = [64, 0], sizes = [64, 32], strides = [1, 1]} : vector<192x32xf32> to vector<64x32xf32>
    %37 = vector.extract_strided_slice %34 {offsets = [128, 0], sizes = [64, 16], strides = [1, 1]} : vector<192x32xf32> to vector<64x16xf32>
    %38 = tpu.concatenate %31, %31, %31, %31 in 0 : vector<16x32xf32>, vector<16x32xf32>, vector<16x32xf32>, vector<16x32xf32> -> vector<64x32xf32>
    %39 = arith.mulf %38, %35 : vector<64x32xf32>
    %cst_12 = arith.constant dense<0.000000e+00> : vector<64x16xf32>
    %40 = tpu.matmul %39, %32, %cst_12 {dimension_numbers = #tpu.dot_dimension_numbers<[1], [1], [0], [0], [0, 0, 1, 0], [], []>} : vector<64x32xf32>, vector<16x32xf32>, vector<64x16xf32> -> vector<64x16xf32>
    %41 = arith.addf %40, %37 : vector<64x16xf32>
    %cst_13 = arith.constant dense<0xFF800000> : vector<64xf32>
    %42 = vector.multi_reduction <maximumf>, %41, %cst_13 [1] : vector<64x16xf32> to vector<64xf32>
    %43 = vector.shape_cast %42 : vector<64xf32> to vector<64x1xf32>
    %44 = vector.broadcast %43 : vector<64x1xf32> to vector<64x16xf32>
    %45 = arith.subf %41, %44 : vector<64x16xf32>
    %46 = math.exp %45 : vector<64x16xf32>
    %cst_14 = arith.constant dense<0.000000e+00> : vector<64xf32>
    %47 = vector.multi_reduction <add>, %46, %cst_14 [1] : vector<64x16xf32> to vector<64xf32>
    %48 = vector.shape_cast %47 : vector<64xf32> to vector<64x1xf32>
    %49 = vector.broadcast %48 : vector<64x1xf32> to vector<64x16xf32>
    %50 = arith.divf %46, %49 : vector<64x16xf32>
    %cst_15 = arith.constant dense<0.000000e+00> : vector<64x32xf32>
    %51 = tpu.matmul %50, %33, %cst_15 {dimension_numbers = #tpu.dot_dimension_numbers<[1], [0], [0], [1], [0, 0, 1, 1], [], []>} : vector<64x16xf32>, vector<16x32xf32>, vector<64x32xf32> -> vector<64x32xf32>
    %52 = arith.mulf %51, %36 : vector<64x32xf32>
    %53 = vector.extract_strided_slice %52 {offsets = [0, 0], sizes = [16, 32], strides = [1, 1]} : vector<64x32xf32> to vector<16x32xf32>
    %54 = vector.extract_strided_slice %52 {offsets = [16, 0], sizes = [16, 32], strides = [1, 1]} : vector<64x32xf32> to vector<16x32xf32>
    %55 = arith.addf %53, %54 : vector<16x32xf32>
    %56 = vector.extract_strided_slice %52 {offsets = [32, 0], sizes = [16, 32], strides = [1, 1]} : vector<64x32xf32> to vector<16x32xf32>
    %57 = arith.addf %55, %56 : vector<16x32xf32>
    %58 = vector.extract_strided_slice %52 {offsets = [48, 0], sizes = [16, 32], strides = [1, 1]} : vector<64x32xf32> to vector<16x32xf32>
    %59 = arith.addf %57, %58 : vector<16x32xf32>
    %cst_16 = arith.constant dense<0.000000e+00> : vector<16x32xf32>
    %60 = tpu.matmul %59, %29, %cst_16 {dimension_numbers = #tpu.dot_dimension_numbers<[1], [0], [0], [1], [0, 0, 1, 1], [], []>} : vector<16x32xf32>, vector<32x32xf32>, vector<16x32xf32> -> vector<16x32xf32>
    %61 = vector.broadcast %4 : vector<1x32xf32> to vector<16x32xf32>
    %62 = arith.addf %60, %61 : vector<16x32xf32>
    %c0_17 = arith.constant 0 : index
    %c0_18 = arith.constant 0 : index
    %63 = vector.load %arg4[%c0_17, %c0_18] : memref<16x32xf32, #tpu.memory_space<vmem>>, vector<16x32xf32>
    tpu.vector_store %arg4[%c0_17, %c0_18], %62 {strides = array<i32>} : memref<16x32xf32, #tpu.memory_space<vmem>>, vector<16x32xf32>,
    return
  }
}

</mosaic_0001>

<llo_original>
// kernel: vit_attention.1
$region0: #{vit_attention.1}
  #allocation0 [shape = 'u32[]', space=smem, size = 0x4, offset = 0x4, fixed_abs, tag = 'smem constant byte address 0x4 - core index']
  #allocation1 [shape = 'u32[144,128]{1,0:T(1,128)}', space=vmem, size = 0x12000, scoped, tag = 'internal scratch']
  %s0 = inlined_call_operand.vmem [shape: f32[16,32], index: 0, kind: input, shape index: {}]
  %s1 = inlined_call_operand.vmem [shape: f32[3,32], index: 1, kind: input, shape index: {}]
  %s2 = inlined_call_operand.vmem [shape: f32[32,128], index: 2, kind: input, shape index: {}]
  %s3 = inlined_call_operand.hbm [shape: f32[192,32], index: 3, kind: input, shape index: {}]
  %s4 = inlined_call_operand.hbm [shape: f32[16,32], index: 4, kind: output, shape index: {}]
  %s5 = sld [smem:[#allocation0]]
  $region30: #{vit_attention.1} parent=0
    _
  %s7 = ssub.s32 1, %s5
  %s8 = scalar_select 0, %s7, %s5
  $region1: #{vit_attention.1} parent=0
    #allocation2 [shape = 'u8[98304]{0}', space=vmem, size = 0x18000, scoped, tag = 'input window, operand 3, single buffered']
    #allocation3 [shape = 's32[1]{0}', space=sflag, size = 0x4, scoped, tag = 'scoped memory for vit_attention.1']
    #allocation4 [shape = 's32[1]{0}', space=sflag, size = 0x4, scoped, tag = 'scoped memory for vit_attention.1']
    #allocation5 [shape = 'u8[8192]{0}', space=vmem, size = 0x2000, scoped, tag = 'output window, operand 0, single buffered']
    %9 = vsyncpa [#allocation3], 0
    %10 = vsyncpa [#allocation4], 0
    // Predicated region
    $region2: #{vit_attention.1} parent=1 // pred_check
      _
    $region3: #{vit_attention.1} parent=1 // pred_check_branch
      %12 = sbr.rel (0) target = $region5
    $region4: #{vit_attention.1} parent=1 // pred_region
      _
    $region5: #{vit_attention.1} parent=1 // pred_fallthru
      _
    // Predicated region
    $region6: #{vit_attention.1} parent=1 // pred_check
      _
    $region7: #{vit_attention.1} parent=1 // pred_check_branch
      %14 = sbr.rel (0) target = $region9
    $region8: #{vit_attention.1} parent=1 // pred_region
      _
    $region9: #{vit_attention.1} parent=1 // pred_fallthru
      _
    // Predicated region
    $region10: #{vit_attention.1} parent=1 // pred_check
      _
    $region11: #{vit_attention.1} parent=1 // pred_check_branch
      %16 = sbr.rel (0) target = $region13
    $region12: #{vit_attention.1} parent=1 // pred_region
      _
    $region13: #{vit_attention.1} parent=1 // pred_fallthru
      _
    // Predicated region
    $region14: #{vit_attention.1} parent=1 // pred_check
      _
    $region15: #{vit_attention.1} parent=1 // pred_check_branch
      %18 = sbr.rel (0) target = $region17
    $region16: #{vit_attention.1} parent=1 // pred_region
      %s20 = ssub.s32 3072, 3072
      %21 = vsyncadd [#allocation3], %s20
      %s22 = sshll.u32 [#allocation2], 4
      %s23 = int_to_ptr.vmem [resolvable:$true] %s22
      %28 = dma.hbm_to_vmem [thread:$0]  %s3, 3072, %s23, [#allocation3], 128, 128, 8
    $region17: #{vit_attention.1} parent=1 // pred_fallthru
      _
    // Predicated region
    $region18: #{vit_attention.1} parent=1 // pred_check
      _
    $region19: #{vit_attention.1} parent=1 // pred_check_branch
      %30 = sbr.rel (0) target = $region21
    $region20: #{vit_attention.1} parent=1 // pred_region
      %31 = dma.done [#allocation3], 3072
    $region21: #{vit_attention.1} parent=1 // pred_fallthru
      _
    %v32 = vld [vmem:[%s0] sm:$0xff]
    %v33 = vld [vmem:[%s0 + $0x8] sm:$0xff]
    %v34 = vld [vmem:[%s1] sm:$0x7]
    %vm35 = vcmask 261120
    %v36 = vsel %vm35, %v32, 0.0
    %37 = vadd.xlane.f32.xlu0 %v36
    %v38 = vpop.xlane.xlu0 %37
    %v39 = vsel %vm35, %v33, 0.0
    %40 = vadd.xlane.f32.xlu0 %v39
    %v41 = vpop.xlane.xlu0 %40
    %v42 = vrcp.pop 32.0
    %v43 = vmul.f32 %v38, %v42
    %v44 = vmul.f32 %v41, %v42
    %v45 = vsub.f32 %v32, %v43
    %v46 = vsub.f32 %v33, %v44
    %v47 = vmul.f32 %v45, %v45
    %v48 = vmul.f32 %v46, %v46
    %v49 = vsel %vm35, %v47, 0.0
    %50 = vadd.xlane.f32.xlu0 %v49
    %v51 = vpop.xlane.xlu0 %50
    %v52 = vsel %vm35, %v48, 0.0
    %53 = vadd.xlane.f32.xlu0 %v52
    %v54 = vpop.xlane.xlu0 %53
    %v55 = vmul.f32 %v51, %v42
    %v56 = vmul.f32 %v54, %v42
    %v57 = vadd.f32 %v55, 1e-05
    %v58 = vadd.f32 %v56, 1e-05
    %v59 = vrsqrt.pop %v57
    %v60 = vrsqrt.pop %v58
    %v61 = vmul.f32 %v45, %v59
    %v62 = vmul.f32 %v46, %v60
    %v63 = vlaneseq
    %v64 = vshrl.u32 %v63, 7
    %v65 = vsub.s32 0, %v64
    %v66 = vrot.slane %v34, %v65
    %v67 = vmul.f32 %v61, %v66
    %v68 = vmul.f32 %v62, %v66
    %v69 = vlaneseq
    %v70 = vshrl.u32 %v69, 7
    %v71 = vsub.s32 1, %v70
    %v72 = vrot.slane %v34, %v71
    %v73 = vadd.f32 %v67, %v72
    %v74 = vadd.f32 %v68, %v72
    %v75 = vld [vmem:[%s2] sm:$0xff]
    %v76 = vld [vmem:[%s2 + $0x8] sm:$0xff]
    %v77 = vld [vmem:[%s2 + $0x10] sm:$0xff]
    %v78 = vld [vmem:[%s2 + $0x18] sm:$0xff]
    %v80 = vsel %vm35, %v73, 0
    %v83 = vsel %vm35, %v74, 0
    %85 = vmatprep.subr.mxu0 0.0
    %86 = vmatpush1.msra.mxu0 %v75
    %87 = vmatprep.subr.mxu0 0.0
    %88 = vmatpush1.msra.mxu0 %v76
    %89 = vmatprep.subr.mxu0 0.0
    %90 = vmatpush1.msra.mxu0 %v77
    %91 = vmatprep.subr.mxu0 0.0
    %92 = vmatpush1.msra.mxu0 %v78
    %93 = vmatprep.subr.mxu0 0.0
    %94 = vmatpush1.msra.mxu0 0.0
    %95 = vmatprep.subr.mxu0 0.0
    %96 = vmatpush1.msra.mxu0 0.0
    %97 = vmatprep.subr.mxu0 0.0
    %98 = vmatpush1.msra.mxu0 0.0
    %99 = vmatprep.subr.mxu0 0.0
    %100 = vmatpush1.msra.mxu0 0.0
    %101 = vmatprep.subr.mxu0 0.0
    %102 = vmatpush1.msra.mxu0 0.0
    %103 = vmatprep.subr.mxu0 0.0
    %104 = vmatpush1.msra.mxu0 0.0
    %105 = vmatprep.subr.mxu0 0.0
    %106 = vmatpush1.msra.mxu0 0.0
    %107 = vmatprep.subr.mxu0 0.0
    %108 = vmatpush1.msra.mxu0 0.0
    %109 = vmatprep.subr.mxu0 0.0
    %110 = vmatpush1.msra.mxu0 0.0
    %111 = vmatprep.subr.mxu0 0.0
    %112 = vmatpush1.msra.mxu0 0.0
    %113 = vmatprep.subr.mxu0 0.0
    %114 = vmatpush1.msra.mxu0 0.0
    %115 = vmatprep.subr.mxu0 0.0
    %116 = vmatpush1.msra.mxu0 0.0
    %117 = vmatprep.subr.mxu0 0.0
    %118 = vmatpush1.msra.mxu0 0.0
    %119 = vmatprep.subr.mxu0 0.0
    %120 = vmatpush1.msra.mxu0 0.0
    %121 = vmatprep.subr.mxu0 0.0
    %122 = vmatpush1.msra.mxu0 0.0
    %123 = vmatprep.subr.mxu0 0.0
    %124 = vmatpush1.msra.mxu0 0.0
    %125 = vmatprep.subr.mxu0 0.0
    %126 = vmatpush1.msra.mxu0 0.0
    %127 = vmatprep.subr.mxu0 0.0
    %128 = vmatpush1.msra.mxu0 0.0
    %129 = vmatprep.subr.mxu0 0.0
    %130 = vmatpush1.msra.mxu0 0.0
    %131 = vmatprep.subr.mxu0 0.0
    %132 = vmatpush1.msra.mxu0 0.0
    %133 = vmatprep.subr.mxu0 0.0
    %134 = vmatpush1.msra.mxu0 0.0
    %135 = vmatprep.subr.mxu0 0.0
    %136 = vmatpush1.msra.mxu0 0.0
    %137 = vmatprep.subr.mxu0 0.0
    %138 = vmatpush1.msra.mxu0 0.0
    %139 = vmatprep.subr.mxu0 0.0
    %140 = vmatpush1.msra.mxu0 0.0
    %141 = vmatprep.subr.mxu0 0.0
    %142 = vmatpush1.msra.mxu0 0.0
    %143 = vmatprep.subr.mxu0 0.0
    %144 = vmatpush1.msra.mxu0 0.0
    %145 = vmatprep.subr.mxu0 0.0
    %146 = vmatpush1.msra.mxu0 0.0
    %147 = vmatprep.subr.mxu0 0.0
    %148 = vmatpush1.msra.mxu0 0.0
    %149 = vmatprep.mubr.f32.mxu0 0.0
    %150 = vmatmul.mubr.f32.gmra.mrb[0].mxu0 %v80
    %v151 = vpop.f32.mrb[0].mxu0
    %v152 = vadd.f32 0.0, %v151
    %v153 = vpop.f32.mrb[0].mxu0
    %154 = vmatprep.mubr.f32.mxu0 0.0
    %155 = vmatmul.mubr.f32.gmra.mrb[0].mxu0 %v83
    %v156 = vpop.f32.mrb[0].mxu0
    %v157 = vadd.f32 0.0, %v156
    %v158 = vpop.f32.mrb[0].mxu0
    %159 = vdwg.mxu0
    %v160 = vld [vmem:[#allocation2] sm:$0xff]
    %v161 = vld [vmem:[#allocation2 + $0x8] sm:$0xff]
    %v162 = vld [vmem:[#allocation2 + $0x10] sm:$0xff]
    %v163 = vld [vmem:[#allocation2 + $0x18] sm:$0xff]
    %v164 = vld [vmem:[#allocation2 + $0x20] sm:$0xff]
    %v165 = vld [vmem:[#allocation2 + $0x28] sm:$0xff]
    %v166 = vld [vmem:[#allocation2 + $0x30] sm:$0xff]
    %v167 = vld [vmem:[#allocation2 + $0x38] sm:$0xff]
    %v168 = vld [vmem:[#allocation2 + $0x40] sm:$0xff]
    %v169 = vld [vmem:[#allocation2 + $0x48] sm:$0xff]
    %v170 = vld [vmem:[#allocation2 + $0x50] sm:$0xff]
    %v171 = vld [vmem:[#allocation2 + $0x58] sm:$0xff]
    %v172 = vld [vmem:[#allocation2 + $0x60] sm:$0xff]
    %v173 = vld [vmem:[#allocation2 + $0x68] sm:$0xff]
    %v174 = vld [vmem:[#allocation2 + $0x70] sm:$0xff]
    %v175 = vld [vmem:[#allocation2 + $0x78] sm:$0xff]
    %v176 = vld [vmem:[#allocation2 + $0x80] sm:$0xff]
    %v177 = vld [vmem:[#allocation2 + $0x88] sm:$0xff]
    %v178 = vld [vmem:[#allocation2 + $0x90] sm:$0xff]
    %v179 = vld [vmem:[#allocation2 + $0x98] sm:$0xff]
    %v180 = vld [vmem:[#allocation2 + $0xa0] sm:$0xff]
    %v181 = vld [vmem:[#allocation2 + $0xa8] sm:$0xff]
    %v182 = vld [vmem:[#allocation2 + $0xb0] sm:$0xff]
    %v183 = vld [vmem:[#allocation2 + $0xb8] sm:$0xff]
    %v184 = vmul.f32 %v152, %v160
    %v185 = vmul.f32 %v157, %v161
    %v186 = vmul.f32 %v152, %v162
    %v187 = vmul.f32 %v157, %v163
    %v188 = vmul.f32 %v152, %v164
    %v189 = vmul.f32 %v157, %v165
    %v190 = vmul.f32 %v152, %v166
    %v191 = vmul.f32 %v157, %v167
    %194 = vrot.lane.b32.xlu0 %v152, 96
    %v195 = vpop.permute.xlu0 %194
    %196 = vrot.lane.b32.xlu0 %v157, 96
    %v197 = vpop.permute.xlu0 %196
    %v199 = vsel %vm35, %v184, 0
    %v202 = vsel %vm35, %v185, 0
    %v205 = vsel %vm35, %v186, 0
    %v208 = vsel %vm35, %v187, 0
    %v211 = vsel %vm35, %v188, 0
    %v214 = vsel %vm35, %v189, 0
    %v217 = vsel %vm35, %v190, 0
    %v220 = vsel %vm35, %v191, 0
    %v222 = vsel %vm35, %v195, 0
    %v224 = vsel %vm35, %v197, 0
    %226 = vmatprep.subr.mxu0 0.0
    %227 = vmatpush1.xpose.msra.mxu0 %v222
    %228 = vmatprep.subr.mxu0 0.0
    %229 = vmatpush1.xpose.msra.mxu0 %v224
    %230 = vmatprep.subr.mxu0 0.0
    %231 = vmatpush1.xpose.msra.mxu0 0.0
    %232 = vmatprep.subr.mxu0 0.0
    %233 = vmatpush1.xpose.msra.mxu0 0.0
    %234 = vmatprep.subr.mxu0 0.0
    %235 = vmatpush1.xpose.msra.mxu0 0.0
    %236 = vmatprep.subr.mxu0 0.0
    %237 = vmatpush1.xpose.msra.mxu0 0.0
    %238 = vmatprep.subr.mxu0 0.0
    %239 = vmatpush1.xpose.msra.mxu0 0.0
    %240 = vmatprep.subr.mxu0 0.0
    %241 = vmatpush1.xpose.msra.mxu0 0.0
    %242 = vmatprep.subr.mxu0 0.0
    %243 = vmatpush1.xpose.msra.mxu0 0.0
    %244 = vmatprep.subr.mxu0 0.0
    %245 = vmatpush1.xpose.msra.mxu0 0.0
    %246 = vmatprep.subr.mxu0 0.0
    %247 = vmatpush1.xpose.msra.mxu0 0.0
    %248 = vmatprep.subr.mxu0 0.0
    %249 = vmatpush1.xpose.msra.mxu0 0.0
    %250 = vmatprep.subr.mxu0 0.0
    %251 = vmatpush1.xpose.msra.mxu0 0.0
    %252 = vmatprep.subr.mxu0 0.0
    %253 = vmatpush1.xpose.msra.mxu0 0.0
    %254 = vmatprep.subr.mxu0 0.0
    %255 = vmatpush1.xpose.msra.mxu0 0.0
    %256 = vmatprep.subr.mxu0 0.0
    %257 = vmatpush1.xpose.msra.mxu0 0.0
    %258 = vmatprep.subr.mxu0 0.0
    %259 = vmatpush1.xpose.msra.mxu0 0.0
    %260 = vmatprep.subr.mxu0 0.0
    %261 = vmatpush1.xpose.msra.mxu0 0.0
    %262 = vmatprep.subr.mxu0 0.0
    %263 = vmatpush1.xpose.msra.mxu0 0.0
    %264 = vmatprep.subr.mxu0 0.0
    %265 = vmatpush1.xpose.msra.mxu0 0.0
    %266 = vmatprep.subr.mxu0 0.0
    %267 = vmatpush1.xpose.msra.mxu0 0.0
    %268 = vmatprep.subr.mxu0 0.0
    %269 = vmatpush1.xpose.msra.mxu0 0.0
    %270 = vmatprep.subr.mxu0 0.0
    %271 = vmatpush1.xpose.msra.mxu0 0.0
    %272 = vmatprep.subr.mxu0 0.0
    %273 = vmatpush1.xpose.msra.mxu0 0.0
    %274 = vmatprep.subr.mxu0 0.0
    %275 = vmatpush1.xpose.msra.mxu0 0.0
    %276 = vmatprep.subr.mxu0 0.0
    %277 = vmatpush1.xpose.msra.mxu0 0.0
    %278 = vmatprep.subr.mxu0 0.0
    %279 = vmatpush1.xpose.msra.mxu0 0.0
    %280 = vmatprep.subr.mxu0 0.0
    %281 = vmatpush1.xpose.msra.mxu0 0.0
    %282 = vmatprep.subr.mxu0 0.0
    %283 = vmatpush1.xpose.msra.mxu0 0.0
    %284 = vmatprep.subr.mxu0 0.0
    %285 = vmatpush1.xpose.msra.mxu0 0.0
    %286 = vmatprep.subr.mxu0 0.0
    %287 = vmatpush1.xpose.msra.mxu0 0.0
    %288 = vmatprep.subr.mxu0 0.0
    %289 = vmatpush1.xpose.msra.mxu0 0.0
    %290 = vmatprep.mubr.f32.mxu0 0.0
    %291 = vmatmul.mubr.f32.gmra.mrb[0].mxu0 %v199
    %v292 = vpop.f32.mrb[0].mxu0
    %v293 = vadd.f32 %v176, %v292
    %v294 = vpop.f32.mrb[0].mxu0
    %295 = vmatprep.mubr.f32.mxu0 0.0
    %296 = vmatmul.mubr.f32.gmra.mrb[0].mxu0 %v202
    %v297 = vpop.f32.mrb[0].mxu0
    %v298 = vadd.f32 %v177, %v297
    %v299 = vpop.f32.mrb[0].mxu0
    %300 = vmatprep.mubr.f32.mxu0 0.0
    %301 = vmatmul.mubr.f32.gmra.mrb[0].mxu0 %v205
    %v302 = vpop.f32.mrb[0].mxu0
    %v303 = vadd.f32 %v178, %v302
    %v304 = vpop.f32.mrb[0].mxu0
    %305 = vmatprep.mubr.f32.mxu0 0.0
    %306 = vmatmul.mubr.f32.gmra.mrb[0].mxu0 %v208
    %v307 = vpop.f32.mrb[0].mxu0
    %v308 = vadd.f32 %v179, %v307
    %v309 = vpop.f32.mrb[0].mxu0
    %310 = vmatprep.mubr.f32.mxu0 0.0
    %311 = vmatmul.mubr.f32.gmra.mrb[0].mxu0 %v211
    %v312 = vpop.f32.mrb[0].mxu0
    %v313 = vadd.f32 %v180, %v312
    %v314 = vpop.f32.mrb[0].mxu0
    %315 = vmatprep.mubr.f32.mxu0 0.0
    %316 = vmatmul.mubr.f32.gmra.mrb[0].mxu0 %v214
    %v317 = vpop.f32.mrb[0].mxu0
    %v318 = vadd.f32 %v181, %v317
    %v319 = vpop.f32.mrb[0].mxu0
    %320 = vmatprep.mubr.f32.mxu0 0.0
    %321 = vmatmul.mubr.f32.gmra.mrb[0].mxu0 %v217
    %v322 = vpop.f32.mrb[0].mxu0
    %v323 = vadd.f32 %v182, %v322
    %v324 = vpop.f32.mrb[0].mxu0
    %325 = vmatprep.mubr.f32.mxu0 0.0
    %326 = vmatmul.mubr.f32.gmra.mrb[0].mxu0 %v220
    %v327 = vpop.f32.mrb[0].mxu0
    %v328 = vadd.f32 %v183, %v327
    %v329 = vpop.f32.mrb[0].mxu0
    %330 = vdwg.mxu0
    %vm331 = vcmask 130048
    %v332 = vsel %vm331, %v293, -inf
    %333 = vmax.xlane.f32.xlu0 %v332
    %v334 = vpop.xlane.xlu0 %333
    %v335 = vsel %vm331, %v298, -inf
    %336 = vmax.xlane.f32.xlu0 %v335
    %v337 = vpop.xlane.xlu0 %336
    %v338 = vsel %vm331, %v303, -inf
    %339 = vmax.xlane.f32.xlu0 %v338
    %v340 = vpop.xlane.xlu0 %339
    %v341 = vsel %vm331, %v308, -inf
    %342 = vmax.xlane.f32.xlu0 %v341
    %v343 = vpop.xlane.xlu0 %342
    %v344 = vsel %vm331, %v313, -inf
    %345 = vmax.xlane.f32.xlu0 %v344
    %v346 = vpop.xlane.xlu0 %345
    %v347 = vsel %vm331, %v318, -inf
    %348 = vmax.xlane.f32.xlu0 %v347
    %v349 = vpop.xlane.xlu0 %348
    %v350 = vsel %vm331, %v323, -inf
    %351 = vmax.xlane.f32.xlu0 %v350
    %v352 = vpop.xlane.xlu0 %351
    %v353 = vsel %vm331, %v328, -inf
    %354 = vmax.xlane.f32.xlu0 %v353
    %v355 = vpop.xlane.xlu0 %354
    %v356 = vsub.f32 %v293, %v334
    %v357 = vsub.f32 %v298, %v337
    %v358 = vsub.f32 %v303, %v340
    %v359 = vsub.f32 %v308, %v343
    %v360 = vsub.f32 %v313, %v346
    %v361 = vsub.f32 %v318, %v349
    %v362 = vsub.f32 %v323, %v352
    %v363 = vsub.f32 %v328, %v355
    %v364 = vmul.f32 %v356, 1.442695
    %v365 = vpow.pop %v364
    %v366 = vmul.f32 %v357, 1.442695
    %v367 = vpow.pop %v366
    %v368 = vmul.f32 %v358, 1.442695
    %v369 = vpow.pop %v368
    %v370 = vmul.f32 %v359, 1.442695
    %v371 = vpow.pop %v370
    %v372 = vmul.f32 %v360, 1.442695
    %v373 = vpow.pop %v372
    %v374 = vmul.f32 %v361, 1.442695
    %v375 = vpow.pop %v374
    %v376 = vmul.f32 %v362, 1.442695
    %v377 = vpow.pop %v376
    %v378 = vmul.f32 %v363, 1.442695
    %v379 = vpow.pop %v378
    %v380 = vsel %vm331, %v365, 0.0
    %381 = vadd.xlane.f32.xlu0 %v380
    %v382 = vpop.xlane.xlu0 %381
    %v383 = vsel %vm331, %v367, 0.0
    %384 = vadd.xlane.f32.xlu0 %v383
    %v385 = vpop.xlane.xlu0 %384
    %v386 = vsel %vm331, %v369, 0.0
    %387 = vadd.xlane.f32.xlu0 %v386
    %v388 = vpop.xlane.xlu0 %387
    %v389 = vsel %vm331, %v371, 0.0
    %390 = vadd.xlane.f32.xlu0 %v389
    %v391 = vpop.xlane.xlu0 %390
    %v392 = vsel %vm331, %v373, 0.0
    %393 = vadd.xlane.f32.xlu0 %v392
    %v394 = vpop.xlane.xlu0 %393
    %v395 = vsel %vm331, %v375, 0.0
    %396 = vadd.xlane.f32.xlu0 %v395
    %v397 = vpop.xlane.xlu0 %396
    %v398 = vsel %vm331, %v377, 0.0
    %399 = vadd.xlane.f32.xlu0 %v398
    %v400 = vpop.xlane.xlu0 %399
    %v401 = vsel %vm331, %v379, 0.0
    %402 = vadd.xlane.f32.xlu0 %v401
    %v403 = vpop.xlane.xlu0 %402
    %v404 = vrcp.pop %v382
    %v405 = vmul.f32 %v365, %v404
    %v406 = vrcp.pop %v385
    %v407 = vmul.f32 %v367, %v406
    %v408 = vrcp.pop %v388
    %v409 = vmul.f32 %v369, %v408
    %v410 = vrcp.pop %v391
    %v411 = vmul.f32 %v371, %v410
    %v412 = vrcp.pop %v394
    %v413 = vmul.f32 %v373, %v412
    %v414 = vrcp.pop %v397
    %v415 = vmul.f32 %v375, %v414
    %v416 = vrcp.pop %v400
    %v417 = vmul.f32 %v377, %v416
    %v418 = vrcp.pop %v403
    %v419 = vmul.f32 %v379, %v418
    %420 = vrot.lane.b32.xlu0 %v152, 64
    %v421 = vpop.permute.xlu0 %420
    %422 = vrot.lane.b32.xlu0 %v157, 64
    %v423 = vpop.permute.xlu0 %422
    %v427 = vsel %vm331, %v405, 0
    %v430 = vsel %vm331, %v407, 0
    %v433 = vsel %vm331, %v409, 0
    %v436 = vsel %vm331, %v411, 0
    %v439 = vsel %vm331, %v413, 0
    %v442 = vsel %vm331, %v415, 0
    %v445 = vsel %vm331, %v417, 0
    %v448 = vsel %vm331, %v419, 0
    %450 = vmatprep.subr.mxu0 0.0
    %451 = vmatpush1.msra.mxu0 %v421
    %452 = vmatprep.subr.mxu0 0.0
    %453 = vmatpush1.msra.mxu0 %v423
    %454 = vmatprep.subr.mxu0 0.0
    %455 = vmatpush1.msra.mxu0 0.0
    %456 = vmatprep.subr.mxu0 0.0
    %457 = vmatpush1.msra.mxu0 0.0
    %458 = vmatprep.subr.mxu0 0.0
    %459 = vmatpush1.msra.mxu0 0.0
    %460 = vmatprep.subr.mxu0 0.0
    %461 = vmatpush1.msra.mxu0 0.0
    %462 = vmatprep.subr.mxu0 0.0
    %463 = vmatpush1.msra.mxu0 0.0
    %464 = vmatprep.subr.mxu0 0.0
    %465 = vmatpush1.msra.mxu0 0.0
    %466 = vmatprep.subr.mxu0 0.0
    %467 = vmatpush1.msra.mxu0 0.0
    %468 = vmatprep.subr.mxu0 0.0
    %469 = vmatpush1.msra.mxu0 0.0
    %470 = vmatprep.subr.mxu0 0.0
    %471 = vmatpush1.msra.mxu0 0.0
    %472 = vmatprep.subr.mxu0 0.0
    %473 = vmatpush1.msra.mxu0 0.0
    %474 = vmatprep.subr.mxu0 0.0
    %475 = vmatpush1.msra.mxu0 0.0
    %476 = vmatprep.subr.mxu0 0.0
    %477 = vmatpush1.msra.mxu0 0.0
    %478 = vmatprep.subr.mxu0 0.0
    %479 = vmatpush1.msra.mxu0 0.0
    %480 = vmatprep.subr.mxu0 0.0
    %481 = vmatpush1.msra.mxu0 0.0
    %482 = vmatprep.subr.mxu0 0.0
    %483 = vmatpush1.msra.mxu0 0.0
    %484 = vmatprep.subr.mxu0 0.0
    %485 = vmatpush1.msra.mxu0 0.0
    %486 = vmatprep.subr.mxu0 0.0
    %487 = vmatpush1.msra.mxu0 0.0
    %488 = vmatprep.subr.mxu0 0.0
    %489 = vmatpush1.msra.mxu0 0.0
    %490 = vmatprep.subr.mxu0 0.0
    %491 = vmatpush1.msra.mxu0 0.0
    %492 = vmatprep.subr.mxu0 0.0
    %493 = vmatpush1.msra.mxu0 0.0
    %494 = vmatprep.subr.mxu0 0.0
    %495 = vmatpush1.msra.mxu0 0.0
    %496 = vmatprep.subr.mxu0 0.0
    %497 = vmatpush1.msra.mxu0 0.0
    %498 = vmatprep.subr.mxu0 0.0
    %499 = vmatpush1.msra.mxu0 0.0
    %500 = vmatprep.subr.mxu0 0.0
    %501 = vmatpush1.msra.mxu0 0.0
    %502 = vmatprep.subr.mxu0 0.0
    %503 = vmatpush1.msra.mxu0 0.0
    %504 = vmatprep.subr.mxu0 0.0
    %505 = vmatpush1.msra.mxu0 0.0
    %506 = vmatprep.subr.mxu0 0.0
    %507 = vmatpush1.msra.mxu0 0.0
    %508 = vmatprep.subr.mxu0 0.0
    %509 = vmatpush1.msra.mxu0 0.0
    %510 = vmatprep.subr.mxu0 0.0
    %511 = vmatpush1.msra.mxu0 0.0
    %512 = vmatprep.subr.mxu0 0.0
    %513 = vmatpush1.msra.mxu0 0.0
    %514 = vmatprep.mubr.f32.mxu0 0.0
    %515 = vmatmul.mubr.f32.gmra.mrb[0].mxu0 %v427
    %v516 = vpop.f32.mrb[0].mxu0
    %v517 = vadd.f32 0.0, %v516
    %v518 = vpop.f32.mrb[0].mxu0
    %519 = vmatprep.mubr.f32.mxu0 0.0
    %520 = vmatmul.mubr.f32.gmra.mrb[0].mxu0 %v430
    %v521 = vpop.f32.mrb[0].mxu0
    %v522 = vadd.f32 0.0, %v521
    %v523 = vpop.f32.mrb[0].mxu0
    %524 = vmatprep.mubr.f32.mxu0 0.0
    %525 = vmatmul.mubr.f32.gmra.mrb[0].mxu0 %v433
    %v526 = vpop.f32.mrb[0].mxu0
    %v527 = vadd.f32 0.0, %v526
    %v528 = vpop.f32.mrb[0].mxu0
    %529 = vmatprep.mubr.f32.mxu0 0.0
    %530 = vmatmul.mubr.f32.gmra.mrb[0].mxu0 %v436
    %v531 = vpop.f32.mrb[0].mxu0
    %v532 = vadd.f32 0.0, %v531
    %v533 = vpop.f32.mrb[0].mxu0
    %534 = vmatprep.mubr.f32.mxu0 0.0
    %535 = vmatmul.mubr.f32.gmra.mrb[0].mxu0 %v439
    %v536 = vpop.f32.mrb[0].mxu0
    %v537 = vadd.f32 0.0, %v536
    %v538 = vpop.f32.mrb[0].mxu0
    %539 = vmatprep.mubr.f32.mxu0 0.0
    %540 = vmatmul.mubr.f32.gmra.mrb[0].mxu0 %v442
    %v541 = vpop.f32.mrb[0].mxu0
    %v542 = vadd.f32 0.0, %v541
    %v543 = vpop.f32.mrb[0].mxu0
    %544 = vmatprep.mubr.f32.mxu0 0.0
    %545 = vmatmul.mubr.f32.gmra.mrb[0].mxu0 %v445
    %v546 = vpop.f32.mrb[0].mxu0
    %v547 = vadd.f32 0.0, %v546
    %v548 = vpop.f32.mrb[0].mxu0
    %549 = vmatprep.mubr.f32.mxu0 0.0
    %550 = vmatmul.mubr.f32.gmra.mrb[0].mxu0 %v448
    %v551 = vpop.f32.mrb[0].mxu0
    %v552 = vadd.f32 0.0, %v551
    %v553 = vpop.f32.mrb[0].mxu0
    %554 = vdwg.mxu0
    %v555 = vmul.f32 %v517, %v168
    %v556 = vmul.f32 %v522, %v169
    %v557 = vmul.f32 %v527, %v170
    %v558 = vmul.f32 %v532, %v171
    %v559 = vmul.f32 %v537, %v172
    %v560 = vmul.f32 %v542, %v173
    %v561 = vmul.f32 %v547, %v174
    %v562 = vmul.f32 %v552, %v175
    %v563 = vadd.f32 %v555, %v557
    %v564 = vadd.f32 %v556, %v558
    %v565 = vadd.f32 %v563, %v559
    %v566 = vadd.f32 %v564, %v560
    %v567 = vadd.f32 %v565, %v561
    %v568 = vadd.f32 %v566, %v562
    %v569 = vlaneseq
    %v570 = vshrl.u32 %v569, 7
    %v571 = vsub.s32 2, %v570
    %v572 = vrot.slane %v34, %v571
    %577 = vrot.lane.b32.xlu0 %v75, 32
    %v578 = vpop.permute.xlu0 %577
    %579 = vrot.lane.b32.xlu0 %v76, 32
    %v580 = vpop.permute.xlu0 %579
    %581 = vrot.lane.b32.xlu0 %v77, 32
    %v582 = vpop.permute.xlu0 %581
    %583 = vrot.lane.b32.xlu0 %v78, 32
    %v584 = vpop.permute.xlu0 %583
    %v590 = vsel %vm35, %v567, 0
    %v593 = vsel %vm35, %v568, 0
    %595 = vmatprep.subr.mxu0 0.0
    %596 = vmatpush1.msra.mxu0 %v578
    %597 = vmatprep.subr.mxu0 0.0
    %598 = vmatpush1.msra.mxu0 %v580
    %599 = vmatprep.subr.mxu0 0.0
    %600 = vmatpush1.msra.mxu0 %v582
    %601 = vmatprep.subr.mxu0 0.0
    %602 = vmatpush1.msra.mxu0 %v584
    %603 = vmatprep.subr.mxu0 0.0
    %604 = vmatpush1.msra.mxu0 0.0
    %605 = vmatprep.subr.mxu0 0.0
    %606 = vmatpush1.msra.mxu0 0.0
    %607 = vmatprep.subr.mxu0 0.0
    %608 = vmatpush1.msra.mxu0 0.0
    %609 = vmatprep.subr.mxu0 0.0
    %610 = vmatpush1.msra.mxu0 0.0
    %611 = vmatprep.subr.mxu0 0.0
    %612 = vmatpush1.msra.mxu0 0.0
    %613 = vmatprep.subr.mxu0 0.0
    %614 = vmatpush1.msra.mxu0 0.0
    %615 = vmatprep.subr.mxu0 0.0
    %616 = vmatpush1.msra.mxu0 0.0
    %617 = vmatprep.subr.mxu0 0.0
    %618 = vmatpush1.msra.mxu0 0.0
    %619 = vmatprep.subr.mxu0 0.0
    %620 = vmatpush1.msra.mxu0 0.0
    %621 = vmatprep.subr.mxu0 0.0
    %622 = vmatpush1.msra.mxu0 0.0
    %623 = vmatprep.subr.mxu0 0.0
    %624 = vmatpush1.msra.mxu0 0.0
    %625 = vmatprep.subr.mxu0 0.0
    %626 = vmatpush1.msra.mxu0 0.0
    %627 = vmatprep.subr.mxu0 0.0
    %628 = vmatpush1.msra.mxu0 0.0
    %629 = vmatprep.subr.mxu0 0.0
    %630 = vmatpush1.msra.mxu0 0.0
    %631 = vmatprep.subr.mxu0 0.0
    %632 = vmatpush1.msra.mxu0 0.0
    %633 = vmatprep.subr.mxu0 0.0
    %634 = vmatpush1.msra.mxu0 0.0
    %635 = vmatprep.subr.mxu0 0.0
    %636 = vmatpush1.msra.mxu0 0.0
    %637 = vmatprep.subr.mxu0 0.0
    %638 = vmatpush1.msra.mxu0 0.0
    %639 = vmatprep.subr.mxu0 0.0
    %640 = vmatpush1.msra.mxu0 0.0
    %641 = vmatprep.subr.mxu0 0.0
    %642 = vmatpush1.msra.mxu0 0.0
    %643 = vmatprep.subr.mxu0 0.0
    %644 = vmatpush1.msra.mxu0 0.0
    %645 = vmatprep.subr.mxu0 0.0
    %646 = vmatpush1.msra.mxu0 0.0
    %647 = vmatprep.subr.mxu0 0.0
    %648 = vmatpush1.msra.mxu0 0.0
    %649 = vmatprep.subr.mxu0 0.0
    %650 = vmatpush1.msra.mxu0 0.0
    %651 = vmatprep.subr.mxu0 0.0
    %652 = vmatpush1.msra.mxu0 0.0
    %653 = vmatprep.subr.mxu0 0.0
    %654 = vmatpush1.msra.mxu0 0.0
    %655 = vmatprep.subr.mxu0 0.0
    %656 = vmatpush1.msra.mxu0 0.0
    %657 = vmatprep.subr.mxu0 0.0
    %658 = vmatpush1.msra.mxu0 0.0
    %659 = vmatprep.mubr.f32.mxu0 0.0
    %660 = vmatmul.mubr.f32.gmra.mrb[0].mxu0 %v590
    %v661 = vpop.f32.mrb[0].mxu0
    %v662 = vadd.f32 %v572, %v661
    %v663 = vpop.f32.mrb[0].mxu0
    %664 = vmatprep.mubr.f32.mxu0 0.0
    %665 = vmatmul.mubr.f32.gmra.mrb[0].mxu0 %v593
    %v666 = vpop.f32.mrb[0].mxu0
    %v667 = vadd.f32 %v572, %v666
    %v668 = vpop.f32.mrb[0].mxu0
    %669 = vdwg.mxu0
    %670 = vst.msk [vmem:[#allocation5] sm:$0xff] %vm35, %v662
    %671 = vst.msk [vmem:[#allocation5 + $0x8] sm:$0xff] %vm35, %v667
    // Predicated region
    $region22: #{vit_attention.1} parent=1 // pred_check
      _
    $region23: #{vit_attention.1} parent=1 // pred_check_branch
      %673 = sbr.rel (0) target = $region25
    $region24: #{vit_attention.1} parent=1 // pred_region
      %s675 = ssub.s32 256, 256
      %676 = vsyncadd [#allocation4], %s675
      %s677 = sshll.u32 [#allocation5], 4
      %s678 = int_to_ptr.vmem [resolvable:$true] %s677
      %683 = dma.vmem_to_hbm [thread:$0]  %s678, 256, %s4, [#allocation4], 128, 128, 8
    $region25: #{vit_attention.1} parent=1 // pred_fallthru
      _
    // Predicated region
    $region26: #{vit_attention.1} parent=1 // pred_check
      _
    $region27: #{vit_attention.1} parent=1 // pred_check_branch
      %685 = sbr.rel (0) target = $region29
    $region28: #{vit_attention.1} parent=1 // pred_region
      %686 = dma.done [#allocation4], 256
    $region29: #{vit_attention.1} parent=1 // pred_fallthru
      _
    %687 = vsyncpa [#allocation3], 1
    %688 = vsyncpa [#allocation4], 1

</llo_original>
